<compile_context>
chip_gen: v7x
topology: tpu7x:2x2x1
jax: 0.10.0
libtpu: 0.0.40
codegen_flags: <defaults>
</compile_context>

<pallas_src>
import functools

import jax
import jax.numpy as jnp
from jax.experimental import pallas as pl
from jax.experimental.pallas import tpu as pltpu


def _round_up(n, m):
    return ((n + m - 1) // m) * m


def _contrastive_loss_kernel(x0_ref, x1_ref, y_ref, out_ref, acc_ref, *,
                             margin, inv_two_batch):
    # Cast the tile (not the HBM array) to f32 — free on the VPU, hidden under DMA.
    x0 = x0_ref[...].astype(jnp.float32)          # (TB, Dp)
    x1 = x1_ref[...].astype(jnp.float32)          # (TB, Dp)
    y = y_ref[...].astype(jnp.float32)            # (TB, 1)

    diff = x0 - x1
    dist_sq = jnp.sum(diff * diff, axis=1, keepdims=True)      # (TB, 1)
    dist = jnp.sqrt(dist_sq)                                    # (TB, 1)
    clamped = jnp.maximum(margin - dist, 0.0)                   # (TB, 1)
    loss = y * dist_sq + (1.0 - y) * (clamped * clamped)        # (TB, 1)
    tile_sum = jnp.sum(loss, keepdims=True)                     # (1, 1)

    @pl.when(pl.program_id(0) == 0)
    def _():
        acc_ref[...] = jnp.zeros_like(acc_ref)

    acc_ref[...] += tile_sum

    @pl.when(pl.program_id(0) == pl.num_programs(0) - 1)
    def _():
        out_ref[...] = acc_ref[...] * inv_two_batch


def contrastive_loss(x0, x1, y, margin=1.0, tile_rows=None):
    """Mirrors contrastive_loss.forward: x0, x1 (B, D); y (B,) -> scalar."""
    # sanity_check equivalent
    assert x0.ndim == 2 and x1.ndim == 2 and y.ndim == 1
    assert x0.shape == x1.shape
    assert x0.shape[0] == y.shape[0]
    assert x0.shape[0] > 0

    B, D = x0.shape

    # Lane-dense feature axis (multiple of 128). Zero padding on both x0 and x1
    # adds nothing to dist_sq, so the result is unchanged.
    Dp = _round_up(D, 128)

    # Row tile: multiple of 8, sized for ~2 MiB of f32 per input tile so the
    # double-buffered pipeline approaches the HBM roofline on all generations
    # without blowing the scoped VMEM budget (v7x: 64 MiB physical).
    if tile_rows is None:
        target_bytes = 2 * 1024 * 1024
        tb = max(8, (target_bytes // (Dp * 4)) // 8 * 8)
    else:
        tb = max(8, _round_up(int(tile_rows), 8))
    tb = min(tb, _round_up(B, 8))
    Bp = _round_up(B, tb)
    num_tiles = Bp // tb

    y2 = y.reshape(B, 1)
    if Bp != B or Dp != D:
        x0 = jnp.pad(x0, ((0, Bp - B), (0, Dp - D)))
        x1 = jnp.pad(x1, ((0, Bp - B), (0, Dp - D)))
        # Pad labels with 1: padded rows have x0 == x1 == 0, so
        # loss = 1*0 + 0*clamp(margin)^2 = 0.
        y2 = jnp.pad(y2, ((0, Bp - B), (0, 0)), constant_values=1)

    # Explicit scoped-VMEM budget: 2 inputs x 2 pipeline buffers + y + slack.
    tile_bytes = tb * Dp * jnp.dtype(x0.dtype).itemsize
    vmem_limit = int(min(max(8 * tile_bytes, 16 * 1024 * 1024),
                         64 * 1024 * 1024))

    kernel = functools.partial(
        _contrastive_loss_kernel,
        margin=float(margin),
        inv_two_batch=float(1.0 / (2.0 * B)),
    )

    out = pl.pallas_call(
        kernel,
        out_shape=jax.ShapeDtypeStruct((1, 1), jnp.float32),
        grid_spec=pltpu.PrefetchScalarGridSpec(
            num_scalar_prefetch=0,
            grid=(num_tiles,),
            in_specs=[
                pl.BlockSpec((tb, Dp), lambda i: (i, 0)),
                pl.BlockSpec((tb, Dp), lambda i: (i, 0)),
                pl.BlockSpec((tb, 1), lambda i: (i, 0)),
            ],
            out_specs=pl.BlockSpec((1, 1), lambda i: (0, 0)),
            scratch_shapes=[pltpu.VMEM((1, 1), jnp.float32)],
        ),
        compiler_params=pltpu.CompilerParams(
            dimension_semantics=("arbitrary",),   # resident scalar accumulator
            vmem_limit_bytes=vmem_limit,
        ),
    )(x0, x1, y2)
    return out[0, 0]


def _reference(x0, x1, y, margin=1.0):
    x0 = x0.astype(jnp.float32)
    x1 = x1.astype(jnp.float32)
    y = y.astype(jnp.float32)
    diff = x0 - x1
    dist_sq = jnp.sum(diff * diff, axis=1)
    dist = jnp.sqrt(dist_sq)
    mdist = margin - dist
    clamped = jnp.maximum(mdist, 0.0)
    loss = y * dist_sq + (1.0 - y) * clamped ** 2
    return jnp.sum(loss) / 2.0 / x0.shape[0]


if __name__ == "__main__":
    key = jax.random.PRNGKey(0)
    k0, k1, k2 = jax.random.split(key, 3)

    # Small shapes consistent with the module: (B, D) features, (B,) labels.
    # Deliberately non-multiples of (8, 128) to exercise the padding paths.
    B, D = 50, 96
    x0 = jax.random.normal(k0, (B, D), dtype=jnp.float32)
    x1 = jax.random.normal(k1, (B, D), dtype=jnp.float32)
    y = jax.random.bernoulli(k2, p=0.5, shape=(B,)).astype(jnp.float32)

    ref = _reference(x0, x1, y, margin=1.0)

    # Multi-tile path (4 grid steps): exercises the accumulator + batch padding.
    out_tiled = jax.block_until_ready(contrastive_loss(x0, x1, y, margin=1.0,
                                                       tile_rows=16))
    assert jnp.allclose(out_tiled, ref, rtol=1e-5, atol=1e-5), (out_tiled, ref)

    # Auto tile size (single grid step for these shapes).
    out_auto = jax.block_until_ready(contrastive_loss(x0, x1, y, margin=1.0))
    assert jnp.allclose(out_auto, ref, rtol=1e-5, atol=1e-5), (out_auto, ref)

    print("KERNEL_OK")
</pallas_src>

<mosaic_0001>
module attributes {stable_mosaic.version = 11 : i64} {
  func.func @_contrastive_loss_kernel(%arg0: i32, %arg1: memref<16x128xf32, #tpu.memory_space<vmem>>, %arg2: memref<16x128xf32, #tpu.memory_space<vmem>>, %arg3: memref<16x1xf32, #tpu.memory_space<vmem>>, %arg4: memref<1x1xf32, #tpu.memory_space<vmem>>, %arg5: memref<1x1xf32, #tpu.memory_space<vmem>>) attributes {dimension_semantics = [#tpu.dimension_semantics<arbitrary>], iteration_bounds = array<i64: 4>, scalar_prefetch = 0 : i64, scratch_operands = 1 : i64, tpu.core_type = #tpu.core_type<tc>, window_params = [{transform_indices = @transform_0, window_bounds = array<i64: 16, 128>}, {transform_indices = @transform_1, window_bounds = array<i64: 16, 128>}, {transform_indices = @transform_2, window_bounds = array<i64: 16, 1>}, {pipeline_mode = #tpu.pipeline_mode<synchronous>, transform_indices = @transform_3, window_bounds = array<i64: 1, 1>}]} {
    %c0 = arith.constant 0 : index
    %c0_0 = arith.constant 0 : index
    %0 = vector.load %arg1[%c0, %c0_0] : memref<16x128xf32, #tpu.memory_space<vmem>>, vector<16x128xf32>
    %c0_1 = arith.constant 0 : index
    %c0_2 = arith.constant 0 : index
    %1 = vector.load %arg2[%c0_1, %c0_2] : memref<16x128xf32, #tpu.memory_space<vmem>>, vector<16x128xf32>
    %c0_3 = arith.constant 0 : index
    %c0_4 = arith.constant 0 : index
    %2 = vector.load %arg3[%c0_3, %c0_4] : memref<16x1xf32, #tpu.memory_space<vmem>>, vector<16x1xf32>
    %3 = arith.subf %0, %1 : vector<16x128xf32>
    %4 = arith.mulf %3, %3 : vector<16x128xf32>
    %cst = arith.constant dense<0.000000e+00> : vector<16xf32>
    %5 = vector.multi_reduction <add>, %4, %cst [1] : vector<16x128xf32> to vector<16xf32>
    %6 = vector.shape_cast %5 : vector<16xf32> to vector<16x1xf32>
    %7 = math.sqrt %6 : vector<16x1xf32>
    %cst_5 = arith.constant 1.000000e+00 : f32
    %8 = vector.broadcast %cst_5 : f32 to vector<16x1xf32>
    %9 = arith.subf %8, %7 : vector<16x1xf32>
    %cst_6 = arith.constant 0.000000e+00 : f32
    %10 = vector.broadcast %cst_6 : f32 to vector<16x1xf32>
    %11 = arith.maximumf %9, %10 : vector<16x1xf32>
    %12 = arith.mulf %2, %6 : vector<16x1xf32>
    %cst_7 = arith.constant 1.000000e+00 : f32
    %13 = vector.broadcast %cst_7 : f32 to vector<16x1xf32>
    %14 = arith.subf %13, %2 : vector<16x1xf32>
    %15 = arith.mulf %11, %11 : vector<16x1xf32>
    %16 = arith.mulf %14, %15 : vector<16x1xf32>
    %17 = arith.addf %12, %16 : vector<16x1xf32>
    %18 = vector.shape_cast %17 : vector<16x1xf32> to vector<1x16x1xf32>
    %cst_8 = arith.constant dense<0.000000e+00> : vector<1xf32>
    %19 = vector.multi_reduction <add>, %18, %cst_8 [1, 2] : vector<1x16x1xf32> to vector<1xf32>
    %20 = vector.shape_cast %19 : vector<1xf32> to vector<1x1x1xf32>
    %21 = vector.extract %20[0, 0, 0] : f32 from vector<1x1x1xf32>
    %22 = vector.broadcast %21 : f32 to vector<1x1xf32>
    %c0_i32 = arith.constant 0 : i32
    %23 = arith.cmpi eq, %arg0, %c0_i32 : i32
    %24 = arith.extui %23 : i1 to i32
    %c0_i32_9 = arith.constant 0 : i32
    %25 = arith.cmpi ne, %24, %c0_i32_9 : i32
    scf.if %25 {
      %cst_15 = arith.constant 0.000000e+00 : f32
      %32 = vector.broadcast %cst_15 : f32 to vector<1x1xf32>
      %c0_16 = arith.constant 0 : index
      %c0_17 = arith.constant 0 : index
      %33 = vector.load %arg5[%c0_16, %c0_17] : memref<1x1xf32, #tpu.memory_space<vmem>>, vector<1x1xf32>
      tpu.vector_store %arg5[%c0_16, %c0_17], %32 {strides = array<i32>} : memref<1x1xf32, #tpu.memory_space<vmem>>, vector<1x1xf32>,
    } else {
    }
    %c0_10 = arith.constant 0 : index
    %c0_11 = arith.constant 0 : index
    %26 = vector.load %arg5[%c0_10, %c0_11] : memref<1x1xf32, #tpu.memory_space<vmem>>, vector<1x1xf32>
    %27 = arith.addf %26, %22 : vector<1x1xf32>
    %c0_12 = arith.constant 0 : index
    %c0_13 = arith.constant 0 : index
    %28 = vector.load %arg5[%c0_12, %c0_13] : memref<1x1xf32, #tpu.memory_space<vmem>>, vector<1x1xf32>
    tpu.vector_store %arg5[%c0_12, %c0_13], %27 {strides = array<i32>} : memref<1x1xf32, #tpu.memory_space<vmem>>, vector<1x1xf32>,
    %c3_i32 = arith.constant 3 : i32
    %29 = arith.cmpi eq, %arg0, %c3_i32 : i32
    %30 = arith.extui %29 : i1 to i32
    %c0_i32_14 = arith.constant 0 : i32
    %31 = arith.cmpi ne, %30, %c0_i32_14 : i32
    scf.if %31 {
      %c0_15 = arith.constant 0 : index
      %c0_16 = arith.constant 0 : index
      %32 = vector.load %arg5[%c0_15, %c0_16] : memref<1x1xf32, #tpu.memory_space<vmem>>, vector<1x1xf32>
      %cst_17 = arith.constant 0.00999999977 : f32
      %33 = vector.broadcast %cst_17 : f32 to vector<1x1xf32>
      %34 = arith.mulf %32, %33 : vector<1x1xf32>
      %c0_18 = arith.constant 0 : index
      %c0_19 = arith.constant 0 : index
      %35 = vector.load %arg4[%c0_18, %c0_19] : memref<1x1xf32, #tpu.memory_space<vmem>>, vector<1x1xf32>
      tpu.vector_store %arg4[%c0_18, %c0_19], %34 {strides = array<i32>} : memref<1x1xf32, #tpu.memory_space<vmem>>, vector<1x1xf32>,
    } else {
    }
    return
  }
  func.func @transform_0(%arg0: i32) -> (i32, i32) {
    %c0_i32 = arith.constant 0 : i32
    %c0_i32_0 = arith.constant 0 : i32
    return %arg0, %c0_i32 : i32, i32
  }
  func.func @transform_1(%arg0: i32) -> (i32, i32) {
    %c0_i32 = arith.constant 0 : i32
    %c0_i32_0 = arith.constant 0 : i32
    return %arg0, %c0_i32 : i32, i32
  }
  func.func @transform_2(%arg0: i32) -> (i32, i32) {
    %c0_i32 = arith.constant 0 : i32
    %c0_i32_0 = arith.constant 0 : i32
    return %arg0, %c0_i32 : i32, i32
  }
  func.func @transform_3(%arg0: i32) -> (i32, i32) {
    %c0_i32 = arith.constant 0 : i32
    %c0_i32_0 = arith.constant 0 : i32
    %c0_i32_1 = arith.constant 0 : i32
    return %c0_i32, %c0_i32_0 : i32, i32
  }
}

</mosaic_0001>

<llo_original>
// kernel: tpu_custom_call.1
$region0: #{tpu_custom_call.1}
  #allocation0 [shape = 'u32[]', space=smem, size = 0x4, offset = 0x4, fixed_abs, tag = 'smem constant byte address 0x4 - core index']
  #allocation1 [shape = 'u32[144,128]{1,0:T(1,128)}', space=vmem, size = 0x12000, scoped, tag = 'internal scratch']
  #allocation2 [shape = 'f32[1,1]{1,0:T(1,128)}', space=vmem, size = 0x200, scoped, tag = 'scratch operand']
  %s0 = inlined_call_operand.vmem [shape: f32[64,128], index: 0, kind: input, shape index: {}]
  %s1 = inlined_call_operand.hbm [shape: f32[64,128], index: 1, kind: input, shape index: {}]
  %s2 = inlined_call_operand.vmem [shape: f32[64,1], index: 2, kind: input, shape index: {}]
  %s3 = inlined_call_operand.hbm [shape: f32[1,1], index: 3, kind: output, shape index: {}]
  %s4 = sld [smem:[#allocation0]]
  $region57: #{tpu_custom_call.1} parent=0
    _
  %s6 = ssub.s32 1, %s4
  %s7 = scalar_select 0, %s6, %s4
  $region1: #{tpu_custom_call.1} parent=0
    #allocation3 [shape = 'u8[16384]{0}', space=vmem, size = 0x4000, scoped, tag = 'input window, operand 1']
    #allocation4 [shape = 's32[2]{0}', space=sflag, size = 0x8, scoped, tag = 'scoped memory for tpu_custom_call.1']
    #allocation5 [shape = 's32[2]{0}', space=sflag, size = 0x8, scoped, tag = 'scoped memory for tpu_custom_call.1']
    #allocation6 [shape = 'u8[512]{0}', space=vmem, size = 0x400, scoped, tag = 'output window, operand 0, single buffered']
    %8 = vsyncpa [#allocation4], 0
    %s9 = scalar_lea.sflag [#allocation4], 1
    %10 = vsyncpa %s9, 0
    %11 = vsyncpa [#allocation5], 0
    loop: start=0, step=1, limit=6
    $region2: #{tpu_custom_call.1} parent=1 // loop_pre_header
      _
    $region3: #{tpu_custom_call.1} parent=1 // loop_header
      %s13 = sphi 0, %s17
      %p14 = scmp.ge.s32.totalorder %s13, 6
      %s23 = sphi 0, %s25
      %s26 = sphi 0, %s23
      %s27 = sphi 0, %s26
      %s43 = sphi 0, %s27
      %s49 = sphi 0, %s51
      %s52 = sphi 0, %s49
      %s53 = sphi 0, %s52
      %s69 = sphi 0, %s53
      %s75 = sphi 0, %s77
      %s78 = sphi 0, %s75
      %s79 = sphi 0, %s78
      %s95 = sphi 0, %s79
      %s99 = sphi 0, %s99
      %s101 = sphi 0, %s99
      %s102 = sphi 0, %s101
      %s116 = sphi 0, %s102
    $region4: #{tpu_custom_call.1} parent=1 // loop_header_branch
      %16 = sbr.rel (%p14) target = $region8
    $region5: #{tpu_custom_call.1} parent=1 // loop_body
      %s18 = ssub.s32 %s13, 1
      %s19 = ssub.s32 %s13, 2
      %s20 = sadd.s32 %s13, 1
      %s21 = ssub.s32 %s13, %s20
      %p22 = scmp.eq.s32.totalorder %s21, 0
      %s24 = sadd.s32 %s23, 1
      %s25 = scalar_select %p22, %s23, %s24
      %p28 = pneg %p22
      %p29 = scmp.eq.s32.totalorder %s13, 3
      %p30 = por %p28, %p29
      %p31 = scmp.ne.s32.totalorder %s23, %s26
      %p32 = scmp.eq.s32.totalorder %s13, 0
      %p33 = por %p31, %p32
      %p34 = scmp.ne.s32.totalorder %s23, %s26
      %p35 = scmp.eq.s32.totalorder %s18, 3
      %p36 = por %p34, %p35
      %p37 = scmp.ne.s32.totalorder %s26, %s27
      %p38 = scmp.eq.s32.totalorder %s18, 0
      %p39 = por %p37, %p38
      %p40 = scmp.ne.s32.totalorder %s26, %s27
      %p41 = scmp.eq.s32.totalorder %s19, 3
      %p42 = por %p40, %p41
      %p44 = scmp.ne.s32.totalorder %s27, %s43
      %p45 = scmp.eq.s32.totalorder %s19, 0
      %p46 = por %p44, %p45
      %s47 = ssub.s32 %s13, %s20
      %p48 = scmp.eq.s32.totalorder %s47, 0
      %s50 = sadd.s32 %s49, 1
      %s51 = scalar_select %p48, %s49, %s50
      %p54 = pneg %p48
      %p55 = scmp.eq.s32.totalorder %s13, 3
      %p56 = por %p54, %p55
      %p57 = scmp.ne.s32.totalorder %s49, %s52
      %p58 = scmp.eq.s32.totalorder %s13, 0
      %p59 = por %p57, %p58
      %p60 = scmp.ne.s32.totalorder %s49, %s52
      %p61 = scmp.eq.s32.totalorder %s18, 3
      %p62 = por %p60, %p61
      %p63 = scmp.ne.s32.totalorder %s52, %s53
      %p64 = scmp.eq.s32.totalorder %s18, 0
      %p65 = por %p63, %p64
      %p66 = scmp.ne.s32.totalorder %s52, %s53
      %p67 = scmp.eq.s32.totalorder %s19, 3
      %p68 = por %p66, %p67
      %p70 = scmp.ne.s32.totalorder %s53, %s69
      %p71 = scmp.eq.s32.totalorder %s19, 0
      %p72 = por %p70, %p71
      %s73 = ssub.s32 %s13, %s20
      %p74 = scmp.eq.s32.totalorder %s73, 0
      %s76 = sadd.s32 %s75, 1
      %s77 = scalar_select %p74, %s75, %s76
      %p80 = pneg %p74
      %p81 = scmp.eq.s32.totalorder %s13, 3
      %p82 = por %p80, %p81
      %p83 = scmp.ne.s32.totalorder %s75, %s78
      %p84 = scmp.eq.s32.totalorder %s13, 0
      %p85 = por %p83, %p84
      %p86 = scmp.ne.s32.totalorder %s75, %s78
      %p87 = scmp.eq.s32.totalorder %s18, 3
      %p88 = por %p86, %p87
      %p89 = scmp.ne.s32.totalorder %s78, %s79
      %p90 = scmp.eq.s32.totalorder %s18, 0
      %p91 = por %p89, %p90
      %p92 = scmp.ne.s32.totalorder %s78, %s79
      %p93 = scmp.eq.s32.totalorder %s19, 3
      %p94 = por %p92, %p93
      %p96 = scmp.ne.s32.totalorder %s79, %s95
      %p97 = scmp.eq.s32.totalorder %s19, 0
      %p98 = por %p96, %p97
      %s100 = sadd.s32 %s99, 1
      %p103 = scmp.eq.s32.totalorder %s13, 3
      %p104 = scmp.ne.s32.totalorder %s99, %s101
      %p105 = scmp.eq.s32.totalorder %s13, 0
      %p106 = por %p104, %p105
      %p107 = scmp.ne.s32.totalorder %s99, %s101
      %p108 = scmp.eq.s32.totalorder %s18, 3
      %p109 = por %p107, %p108
      %p110 = scmp.ne.s32.totalorder %s101, %s102
      %p111 = scmp.eq.s32.totalorder %s18, 0
      %p112 = por %p110, %p111
      %p113 = scmp.ne.s32.totalorder %s101, %s102
      %p114 = scmp.eq.s32.totalorder %s19, 3
      %p115 = por %p113, %p114
      %p117 = scmp.ne.s32.totalorder %s102, %s116
      %p118 = scmp.eq.s32.totalorder %s19, 0
      %p119 = por %p117, %p118
      %p120 = scmp.le.s32.totalorder 1, %s13
      %p121 = scmp.lt.s32.totalorder %s13, 5
      %p122 = pnand %p120, %p121
      %p123 = pneg %p122
      // Predicated region
      $region9: #{tpu_custom_call.1} parent=5 // pred_check
        _
      $region10: #{tpu_custom_call.1} parent=5 // pred_check_branch
        %125 = sbr.rel (%p122) target = $region12
      $region11: #{tpu_custom_call.1} parent=5 // pred_region
        %s126 = ssub.s32 %s13, 1
      $region12: #{tpu_custom_call.1} parent=5 // pred_fallthru
        _
      %p127 = scmp.lt.s32.totalorder %s13, 4
      // Predicated region
      $region13: #{tpu_custom_call.1} parent=5 // pred_check
        %p128 = pneg %p127
      $region14: #{tpu_custom_call.1} parent=5 // pred_check_branch
        %130 = sbr.rel (%p128) target = $region16
      $region15: #{tpu_custom_call.1} parent=5 // pred_region
        // Predicated region
        $region17: #{tpu_custom_call.1} parent=15 // pred_check
          %p131 = pneg %p33
        $region18: #{tpu_custom_call.1} parent=15 // pred_check_branch
          %133 = sbr.rel (%p131) target = $region20
        $region19: #{tpu_custom_call.1} parent=15 // pred_region
          %s134 = smul.u32 2, %s13
          %p135 = scmp.lt.s32.totalorder %s134, 7
          %s136 = scalar_select %p135, %s134, 7
          %s137 = smul.addr %s136, 8
          %s138 = scalar_lea.vmem %s0, %s137
          %s139 = smul.u32 2, %s13
        $region20: #{tpu_custom_call.1} parent=15 // pred_fallthru
          _
        // Predicated region
        $region21: #{tpu_custom_call.1} parent=15 // pred_check
          %p140 = pneg %p59
        $region22: #{tpu_custom_call.1} parent=15 // pred_check_branch
          %142 = sbr.rel (%p140) target = $region24
        $region23: #{tpu_custom_call.1} parent=15 // pred_region
          %s143 = sand.u32 %s49, 1
          %s144 = scalar_lea.sflag [#allocation4], %s143
          %s145 = sand.u32 %s49, 1
          %s146 = smul.addr %s145, 16
          %s147 = scalar_lea.vmem [#allocation3], %s146
          %s148 = smul.u32 2, %s13
          %s150 = ssub.s32 256, 256
          %151 = vsyncadd %s144, %s150
          %s152 = smul.addr %s148, 128
          %s153 = scalar_lea.hbm %s1, %s152
          %s154 = sshll.u32 %s147, 4
          %s155 = int_to_ptr.vmem [resolvable:$true] %s154
          %160 = dma.hbm_to_vmem [thread:$0]  %s153, 256, %s155, %s144, 128, 128, 8
        $region24: #{tpu_custom_call.1} parent=15 // pred_fallthru
          _
        // Predicated region
        $region25: #{tpu_custom_call.1} parent=15 // pred_check
          %p161 = pneg %p85
        $region26: #{tpu_custom_call.1} parent=15 // pred_check_branch
          %163 = sbr.rel (%p161) target = $region28
        $region27: #{tpu_custom_call.1} parent=15 // pred_region
          %s164 = smul.u32 2, %s13
          %p165 = scmp.lt.s32.totalorder %s164, 7
          %s166 = scalar_select %p165, %s164, 7
          %s167 = smul.addr %s166, 8
          %s168 = scalar_lea.vmem %s2, %s167
          %s169 = smul.u32 2, %s13
        $region28: #{tpu_custom_call.1} parent=15 // pred_fallthru
          _
      $region16: #{tpu_custom_call.1} parent=5 // pred_fallthru
        _
      %p170 = scmp.le.s32.totalorder 1, %s13
      %p171 = scmp.lt.s32.totalorder %s13, 5
      %p172 = pnand %p170, %p171
      %p173 = pneg %p172
      // Predicated region
      $region29: #{tpu_custom_call.1} parent=5 // pred_check
        _
      $region30: #{tpu_custom_call.1} parent=5 // pred_check_branch
        %175 = sbr.rel (%p172) target = $region32
      $region31: #{tpu_custom_call.1} parent=5 // pred_region
        %s176 = ssub.s32 %s13, 1
        %s177 = sand.u32 %s52, 1
        %s178 = scalar_lea.sflag [#allocation4], %s177
        %s179 = sand.u32 %s52, 1
        %s180 = smul.addr %s179, 16
        %s181 = scalar_lea.vmem [#allocation3], %s180
        // Predicated region
        $region33: #{tpu_custom_call.1} parent=31 // pred_check
          %p182 = pneg %p65
        $region34: #{tpu_custom_call.1} parent=31 // pred_check_branch
          %184 = sbr.rel (%p182) target = $region36
        $region35: #{tpu_custom_call.1} parent=31 // pred_region
          %185 = dma.done %s178, 256
        $region36: #{tpu_custom_call.1} parent=31 // pred_fallthru
          _
        %s186 = smul.u32 2, %s18
        %p187 = scmp.lt.s32.totalorder %s186, 7
        %s188 = scalar_select %p187, %s186, 7
        %s189 = smul.addr %s188, 8
        %s190 = scalar_lea.vmem %s0, %s189
        %p191 = pneg %p39
        %p192 = pneg %p36
        %s193 = sand.u32 %s52, 1
        %s194 = scalar_lea.sflag [#allocation4], %s193
        %s195 = sand.u32 %s52, 1
        %s196 = smul.addr %s195, 16
        %s197 = scalar_lea.vmem [#allocation3], %s196
        %p198 = pneg %p65
        %p199 = pneg %p62
        %s200 = smul.u32 2, %s18
        %p201 = scmp.lt.s32.totalorder %s200, 7
        %s202 = scalar_select %p201, %s200, 7
        %s203 = smul.addr %s202, 8
        %s204 = scalar_lea.vmem %s2, %s203
        %p205 = pneg %p91
        %p206 = pneg %p88
        %p207 = pneg %p112
        %p208 = pneg %p109
        %s209 = smul.u32 2, %s18
        %p210 = scmp.lt.s32.totalorder %s209, 7
        %s211 = scalar_select %p210, %s209, 7
        %s212 = smul.addr %s211, 8
        %s213 = scalar_lea.vmem %s0, %s212
        %s214 = smul.u32 2, %s18
        %s215 = smul.u32 2, %s18
        %s216 = smul.u32 2, %s18
        %p217 = scmp.lt.s32.totalorder %s216, 7
        %s218 = scalar_select %p217, %s216, 7
        %s219 = smul.addr %s218, 8
        %s220 = scalar_lea.vmem %s2, %s219
        %s221 = smul.u32 2, %s18
        %v222 = vld [vmem:[%s213] sm:$0xff]
        %v223 = vld [vmem:[%s213 + $0x8] sm:$0xff]
        %v224 = vld [vmem:[%s181] sm:$0xff]
        %v225 = vld [vmem:[%s181 + $0x8] sm:$0xff]
        %v226 = vld [vmem:[%s220] sm:$0xff]
        %v227 = vld [vmem:[%s220 + $0x8] sm:$0xff]
        %v228 = vsub.f32 %v222, %v224
        %v229 = vsub.f32 %v223, %v225
        %v230 = vmul.f32 %v228, %v228
        %v231 = vmul.f32 %v229, %v229
        %232 = vadd.xlane.f32.xlu0 %v230
        %v233 = vpop.xlane.xlu0 %232
        %234 = vadd.xlane.f32.xlu0 %v231
        %v235 = vpop.xlane.xlu0 %234
        %v236 = vrsqrt.pop %v233
        %v237 = vmul.f32 %v233, %v236
        %vm238 = vcmp.eq.f32.partialorder %v233, inf
        %v239 = vsel %vm238, %v233, %v237
        %vm240 = vcmp.eq.f32.partialorder %v233, 0.0
        %v241 = vand.u32 %v233, 2147483648
        %v242 = vsel %vm240, %v241, %v239
        %v243 = vrsqrt.pop %v235
        %v244 = vmul.f32 %v235, %v243
        %vm245 = vcmp.eq.f32.partialorder %v235, inf
        %v246 = vsel %vm245, %v235, %v244
        %vm247 = vcmp.eq.f32.partialorder %v235, 0.0
        %v248 = vand.u32 %v235, 2147483648
        %v249 = vsel %vm247, %v248, %v246
        %v250 = vsub.f32 1.0, %v242
        %v251 = vsub.f32 1.0, %v249
        %v252 = vmax.f32 %v250, 0.0
        %v253 = vmax.f32 %v251, 0.0
        %v254 = vmul.f32 %v226, %v233
        %v255 = vmul.f32 %v227, %v235
        %v256 = vsub.f32 1.0, %v226
        %v257 = vsub.f32 1.0, %v227
        %v258 = vmul.f32 %v252, %v252
        %v259 = vmul.f32 %v253, %v253
        %v260 = vmul.f32 %v256, %v258
        %v261 = vmul.f32 %v257, %v259
        %v262 = vadd.f32 %v254, %v260
        %v263 = vadd.f32 %v255, %v261
        %vm264 = vcmask 7168
        %v265 = vsel %vm264, %v262, 0.0
        %v266 = vsel %vm264, %v263, 0.0
        %v267 = vadd.f32 %v265, %v266
        %268 = vadd.xlane.f32.xlu0 %v267
        %v269 = vpop.xlane.xlu0 %268
        %v270 = vrot.slane %v269, 4
        %v271 = vadd.f32 %v269, %v270
        %v272 = vrot.slane %v271, 2
        %v273 = vadd.f32 %v271, %v272
        %v274 = vrot.slane %v273, 1
        %v275 = vadd.f32 %v273, %v274
        %s276 = vtos %v275
        %v277 = vstv %s276
        %p278 = scmp.eq.s32.totalorder %s18, 0
        // Predicated region
        $region37: #{tpu_custom_call.1} parent=31 // pred_check
          %p279 = pneg %p278
        $region38: #{tpu_custom_call.1} parent=31 // pred_check_branch
          %281 = sbr.rel (%p279) target = $region40
        $region39: #{tpu_custom_call.1} parent=31 // pred_region
          %vm282 = vcmask 0
          %283 = vst.msk [vmem:[#allocation2] sm:$0x1] %vm282, 0.0
        $region40: #{tpu_custom_call.1} parent=31 // pred_fallthru
          _
        %v284 = vld [vmem:[#allocation2] sm:$0x1]
        %v285 = vadd.f32 %v284, %v277
        %vm286 = vcmask 0
        %287 = vst.msk [vmem:[#allocation2] sm:$0x1] %vm286, %v285
        %p288 = scmp.eq.s32.totalorder %s18, 3
        // Predicated region
        $region41: #{tpu_custom_call.1} parent=31 // pred_check
          %p289 = pneg %p288
        $region42: #{tpu_custom_call.1} parent=31 // pred_check_branch
          %291 = sbr.rel (%p289) target = $region44
        $region43: #{tpu_custom_call.1} parent=31 // pred_region
          %v292 = vld [vmem:[#allocation2] sm:$0x1]
          %v293 = vmul.f32 %v292, 0.01
          %294 = vst.msk [vmem:[#allocation6] sm:$0x1] %vm286, %v293
        $region44: #{tpu_custom_call.1} parent=31 // pred_fallthru
          _
        // Predicated region
        $region45: #{tpu_custom_call.1} parent=31 // pred_check
          %p295 = pneg %p109
        $region46: #{tpu_custom_call.1} parent=31 // pred_check_branch
          %297 = sbr.rel (%p295) target = $region48
        $region47: #{tpu_custom_call.1} parent=31 // pred_region
          %s299 = ssub.s32 16, 16
          %300 = vsyncadd [#allocation5], %s299
          %s302 = sshll.u32 [#allocation6], 4
          %s303 = int_to_ptr.vmem [resolvable:$true] %s302
          %305 = dma.vmem_to_hbm [thread:$0]  %s303, 16, %s3, [#allocation5]
        $region48: #{tpu_custom_call.1} parent=31 // pred_fallthru
          _
        // Predicated region
        $region49: #{tpu_custom_call.1} parent=31 // pred_check
          %p306 = pneg %p109
        $region50: #{tpu_custom_call.1} parent=31 // pred_check_branch
          %308 = sbr.rel (%p306) target = $region52
        $region51: #{tpu_custom_call.1} parent=31 // pred_region
          %309 = dma.done [#allocation5], 16
        $region52: #{tpu_custom_call.1} parent=31 // pred_fallthru
          _
      $region32: #{tpu_custom_call.1} parent=5 // pred_fallthru
        _
      %p310 = scmp.le.s32.totalorder 2, %s13
      // Predicated region
      $region53: #{tpu_custom_call.1} parent=5 // pred_check
        %p311 = pneg %p310
      $region54: #{tpu_custom_call.1} parent=5 // pred_check_branch
        %313 = sbr.rel (%p311) target = $region56
      $region55: #{tpu_custom_call.1} parent=5 // pred_region
        %s314 = ssub.s32 %s13, 2
      $region56: #{tpu_custom_call.1} parent=5 // pred_fallthru
        _
    $region6: #{tpu_custom_call.1} parent=1 // loop_footer
      %s17 = sadd.s32 1, %s13
    $region7: #{tpu_custom_call.1} parent=1 // loop_footer_branch
      %12 = sbr.rel target = $region3
    $region8: #{tpu_custom_call.1} parent=1 // loop_exit
      _
    %315 = vsyncpa [#allocation4], 1
    %s316 = scalar_lea.sflag [#allocation4], 1
    %317 = vsyncpa %s316, 1
    %318 = vsyncpa [#allocation5], 1
    %s319 = scalar_lea.sflag [#allocation5], 1
    %320 = vsyncpa %s319, 1

</llo_original>
